<compile_context>
chip_gen: v7x
topology: tpu7x:2x2x1
jax: 0.10.0
libtpu: 0.0.40
codegen_flags: <defaults>
</compile_context>

<pallas_src>
import jax
import jax.numpy as jnp
from jax.experimental import pallas as pl
from jax.experimental.pallas import tpu as pltpu


def mlp_kernel(xt_ref, w1_ref, b1_ref, w2_ref, b2_ref, ot_ref):
    """Batch-on-lanes MLP tile.

    xt_ref : (in, bm)      input tile, batch on lanes (lane-dense)
    w1_ref : (hidden, in)  layer-1 weight (PyTorch (out, in) layout)
    b1_ref : (hidden, 1)   layer-1 bias (broadcast over lanes)
    w2_ref : (out, hidden) layer-2 weight
    b2_ref : (out, 1)      layer-2 bias
    ot_ref : (out, bm)     output tile, batch on lanes (lane-dense)
    """
    h = jnp.dot(w1_ref[...], xt_ref[...], preferred_element_type=jnp.float32)
    h = jax.nn.sigmoid(h + b1_ref[...])          # logistic -> EUP slot
    y = jnp.dot(w2_ref[...], h, preferred_element_type=jnp.float32)
    ot_ref[...] = (y + b2_ref[...]).astype(ot_ref.dtype)


def _choose_bm(batch):
    """Largest power-of-two tile <= 1024 (>=128) that keeps >= 2 grid steps."""
    bm = 1024
    while bm > 128 and pl.cdiv(batch, bm) < 2:
        bm //= 2
    return bm


@jax.jit
def mlp_forward(x, w1, b1, w2, b2):
    """x:(B,in) f32; w1:(hidden,in); b1:(hidden,); w2:(out,hidden); b2:(out,)."""
    B, in_size = x.shape
    hidden = w1.shape[0]
    out_size = w2.shape[0]

    xt = x.T                                  # (in, B)   batch on lanes
    b1c = b1.reshape(hidden, 1)
    b2c = b2.reshape(out_size, 1)
    out_shape = jax.ShapeDtypeStruct((out_size, B), jnp.float32)

    if B >= 256:
        bm = _choose_bm(B)
        ot = pl.pallas_call(
            mlp_kernel,
            out_shape=out_shape,
            grid=(pl.cdiv(B, bm),),           # ragged last block handled by Pallas
            in_specs=[
                pl.BlockSpec((in_size, bm), lambda i: (0, i)),
                pl.BlockSpec((hidden, in_size), lambda i: (0, 0)),
                pl.BlockSpec((hidden, 1), lambda i: (0, 0)),
                pl.BlockSpec((out_size, hidden), lambda i: (0, 0)),
                pl.BlockSpec((out_size, 1), lambda i: (0, 0)),
            ],
            out_specs=pl.BlockSpec((out_size, bm), lambda i: (0, i)),
            compiler_params=pltpu.CompilerParams(
                dimension_semantics=("parallel",)),
        )(xt, w1, b1c, w2, b2c)
    else:
        # Small-batch path: no grid machinery, whole (KB-scale) working set in VMEM.
        vmem = pl.BlockSpec(memory_space=pltpu.MemorySpace.VMEM)
        ot = pl.pallas_call(
            mlp_kernel,
            out_shape=out_shape,
            in_specs=[vmem, vmem, vmem, vmem, vmem],
            out_specs=vmem,
        )(xt, w1, b1c, w2, b2c)

    return ot.T                               # back to (B, out)


def init_linear_params(key, fan_in, fan_out):
    # Mimic PyTorch nn.Linear default init: U(-1/sqrt(fan_in), 1/sqrt(fan_in)),
    # stored in PyTorch layout: W:(out, in), b:(out,).
    kw, kb = jax.random.split(key)
    bound = 1.0 / jnp.sqrt(fan_in)
    w = jax.random.uniform(kw, (fan_out, fan_in), jnp.float32, -bound, bound)
    b = jax.random.uniform(kb, (fan_out,), jnp.float32, -bound, bound)
    return w, b


def _reference(x, w1, b1, w2, b2):
    return jax.nn.sigmoid(x @ w1.T + b1) @ w2.T + b2


if __name__ == "__main__":
    input_size = 4     # Iris features
    hidden_size = 16
    output_size = 3

    key = jax.random.PRNGKey(0)
    kx_small, kx_big, k1, k2 = jax.random.split(key, 4)

    w1, b1 = init_linear_params(k1, input_size, hidden_size)
    w2, b2 = init_linear_params(k2, hidden_size, output_size)

    # Small-batch path (matches the original Iris use-case).
    x_small = jax.random.normal(kx_small, (8, input_size), jnp.float32)
    out_small = mlp_forward(x_small, w1, b1, w2, b2)
    jax.block_until_ready(out_small)
    ref_small = _reference(x_small, w1, b1, w2, b2)
    assert out_small.shape == (8, output_size)
    assert jnp.allclose(out_small, ref_small, atol=1e-4, rtol=1e-4)

    # Tiled path with a ragged batch (exercises cdiv grid + 2 parallel steps).
    x_big = jax.random.normal(kx_big, (1000, input_size), jnp.float32)
    out_big = mlp_forward(x_big, w1, b1, w2, b2)
    jax.block_until_ready(out_big)
    ref_big = _reference(x_big, w1, b1, w2, b2)
    assert out_big.shape == (1000, output_size)
    assert jnp.allclose(out_big, ref_big, atol=1e-4, rtol=1e-4)

    print("KERNEL_OK")
</pallas_src>

<mosaic_0001>
module attributes {stable_mosaic.version = 11 : i64} {
  func.func @mlp_kernel(%arg0: memref<4x8xf32, #tpu.memory_space<vmem>>, %arg1: memref<16x4xf32, #tpu.memory_space<vmem>>, %arg2: memref<16x1xf32, #tpu.memory_space<vmem>>, %arg3: memref<3x16xf32, #tpu.memory_space<vmem>>, %arg4: memref<3x1xf32, #tpu.memory_space<vmem>>, %arg5: memref<3x8xf32, #tpu.memory_space<vmem>>) attributes {dimension_semantics = [], scalar_prefetch = 0 : i64, scratch_operands = 0 : i64, tpu.core_type = #tpu.core_type<tc>} {
    %c0 = arith.constant 0 : index
    %c0_0 = arith.constant 0 : index
    %0 = vector.load %arg1[%c0, %c0_0] : memref<16x4xf32, #tpu.memory_space<vmem>>, vector<16x4xf32>
    %c0_1 = arith.constant 0 : index
    %c0_2 = arith.constant 0 : index
    %1 = vector.load %arg0[%c0_1, %c0_2] : memref<4x8xf32, #tpu.memory_space<vmem>>, vector<4x8xf32>
    %cst = arith.constant dense<0.000000e+00> : vector<16x8xf32>
    %2 = tpu.matmul %0, %1, %cst {dimension_numbers = #tpu.dot_dimension_numbers<[1], [0], [0], [1], [0, 0, 1, 1], [], []>} : vector<16x4xf32>, vector<4x8xf32>, vector<16x8xf32> -> vector<16x8xf32>
    %c0_3 = arith.constant 0 : index
    %c0_4 = arith.constant 0 : index
    %3 = vector.load %arg2[%c0_3, %c0_4] : memref<16x1xf32, #tpu.memory_space<vmem>>, vector<16x1xf32>
    %4 = vector.broadcast %3 : vector<16x1xf32> to vector<16x8xf32>
    %5 = arith.addf %2, %4 : vector<16x8xf32>
    %6 = arith.negf %5 : vector<16x8xf32>
    %7 = math.exp %6 : vector<16x8xf32>
    %cst_5 = arith.constant 1.000000e+00 : f32
    %8 = vector.broadcast %cst_5 : f32 to vector<16x8xf32>
    %9 = arith.addf %8, %7 : vector<16x8xf32>
    %10 = arith.divf %8, %9 : vector<16x8xf32>
    %c0_6 = arith.constant 0 : index
    %c0_7 = arith.constant 0 : index
    %11 = vector.load %arg3[%c0_6, %c0_7] : memref<3x16xf32, #tpu.memory_space<vmem>>, vector<3x16xf32>
    %cst_8 = arith.constant dense<0.000000e+00> : vector<3x8xf32>
    %12 = tpu.matmul %11, %10, %cst_8 {dimension_numbers = #tpu.dot_dimension_numbers<[1], [0], [0], [1], [0, 0, 1, 1], [], []>} : vector<3x16xf32>, vector<16x8xf32>, vector<3x8xf32> -> vector<3x8xf32>
    %c0_9 = arith.constant 0 : index
    %c0_10 = arith.constant 0 : index
    %13 = vector.load %arg4[%c0_9, %c0_10] : memref<3x1xf32, #tpu.memory_space<vmem>>, vector<3x1xf32>
    %14 = vector.broadcast %13 : vector<3x1xf32> to vector<3x8xf32>
    %15 = arith.addf %12, %14 : vector<3x8xf32>
    %c0_11 = arith.constant 0 : index
    %c0_12 = arith.constant 0 : index
    %16 = vector.load %arg5[%c0_11, %c0_12] : memref<3x8xf32, #tpu.memory_space<vmem>>, vector<3x8xf32>
    tpu.vector_store %arg5[%c0_11, %c0_12], %15 {strides = array<i32>} : memref<3x8xf32, #tpu.memory_space<vmem>>, vector<3x8xf32>,
    return
  }
}

</mosaic_0001>

<llo_original>
// kernel: mlp_forward.1
$region0: #{mlp_forward.1}
  #allocation0 [shape = 'u32[]', space=smem, size = 0x4, offset = 0x4, fixed_abs, tag = 'smem constant byte address 0x4 - core index']
  #allocation1 [shape = 'u32[144,128]{1,0:T(1,128)}', space=vmem, size = 0x12000, scoped, tag = 'internal scratch']
  %s0 = inlined_call_operand.vmem [shape: f32[4,8], index: 0, kind: input, shape index: {}]
  %s1 = inlined_call_operand.vmem [shape: f32[16,4], index: 1, kind: input, shape index: {}]
  %s2 = inlined_call_operand.vmem [shape: f32[16,1], index: 2, kind: input, shape index: {}]
  %s3 = inlined_call_operand.vmem [shape: f32[3,16], index: 3, kind: input, shape index: {}]
  %s4 = inlined_call_operand.vmem [shape: f32[3,1], index: 4, kind: input, shape index: {}]
  %s5 = inlined_call_operand.hbm [shape: f32[3,8], index: 5, kind: output, shape index: {}]
  %s6 = sld [smem:[#allocation0]]
  $region30: #{mlp_forward.1} parent=0
    _
  %s8 = ssub.s32 1, %s6
  %s9 = scalar_select 0, %s8, %s6
  $region1: #{mlp_forward.1} parent=0
    #allocation2 [shape = 'u8[2048]{0}', space=vmem, size = 0x800, scoped, tag = 'output window, operand 0, single buffered']
    #allocation3 [shape = 's32[1]{0}', space=sflag, size = 0x4, scoped, tag = 'scoped memory for mlp_forward.1']
    %10 = vsyncpa [#allocation3], 0
    // Predicated region
    $region2: #{mlp_forward.1} parent=1 // pred_check
      _
    $region3: #{mlp_forward.1} parent=1 // pred_check_branch
      %12 = sbr.rel (0) target = $region5
    $region4: #{mlp_forward.1} parent=1 // pred_region
      _
    $region5: #{mlp_forward.1} parent=1 // pred_fallthru
      _
    // Predicated region
    $region6: #{mlp_forward.1} parent=1 // pred_check
      _
    $region7: #{mlp_forward.1} parent=1 // pred_check_branch
      %14 = sbr.rel (0) target = $region9
    $region8: #{mlp_forward.1} parent=1 // pred_region
      _
    $region9: #{mlp_forward.1} parent=1 // pred_fallthru
      _
    // Predicated region
    $region10: #{mlp_forward.1} parent=1 // pred_check
      _
    $region11: #{mlp_forward.1} parent=1 // pred_check_branch
      %16 = sbr.rel (0) target = $region13
    $region12: #{mlp_forward.1} parent=1 // pred_region
      _
    $region13: #{mlp_forward.1} parent=1 // pred_fallthru
      _
    // Predicated region
    $region14: #{mlp_forward.1} parent=1 // pred_check
      _
    $region15: #{mlp_forward.1} parent=1 // pred_check_branch
      %18 = sbr.rel (0) target = $region17
    $region16: #{mlp_forward.1} parent=1 // pred_region
      _
    $region17: #{mlp_forward.1} parent=1 // pred_fallthru
      _
    // Predicated region
    $region18: #{mlp_forward.1} parent=1 // pred_check
      _
    $region19: #{mlp_forward.1} parent=1 // pred_check_branch
      %20 = sbr.rel (0) target = $region21
    $region20: #{mlp_forward.1} parent=1 // pred_region
      _
    $region21: #{mlp_forward.1} parent=1 // pred_fallthru
      _
    %v21 = vld [vmem:[%s1] sm:$0xff]
    %v22 = vld [vmem:[%s1 + $0x8] sm:$0xff]
    %v23 = vld [vmem:[%s0] sm:$0xf]
    %v24 = vld [vmem:[%s2] sm:$0xff]
    %v25 = vld [vmem:[%s2 + $0x8] sm:$0xff]
    %27 = vset.pattern.permute.xlu0 0
    %28 = vperm.xlu0 %27, %v24
    %v29 = vpop.permute.xlu0 %28
    %32 = vset.pattern.permute.xlu0 0
    %33 = vperm.xlu0 %32, %v25
    %v34 = vpop.permute.xlu0 %33
    %vm36 = vcmask 31744
    %v38 = vsel %vm36, %v21, 0
    %v41 = vsel %vm36, %v22, 0
    %vm43 = vcmask 1043456
    %v45 = vsel %vm43, %v23, 0
    %47 = vmatprep.subr.mxu0 0.0
    %48 = vmatpush1.msra.mxu0 %v45
    %49 = vmatprep.subr.mxu0 0.0
    %50 = vmatpush1.msra.mxu0 0.0
    %51 = vmatprep.subr.mxu0 0.0
    %52 = vmatpush1.msra.mxu0 0.0
    %53 = vmatprep.subr.mxu0 0.0
    %54 = vmatpush1.msra.mxu0 0.0
    %55 = vmatprep.subr.mxu0 0.0
    %56 = vmatpush1.msra.mxu0 0.0
    %57 = vmatprep.subr.mxu0 0.0
    %58 = vmatpush1.msra.mxu0 0.0
    %59 = vmatprep.subr.mxu0 0.0
    %60 = vmatpush1.msra.mxu0 0.0
    %61 = vmatprep.subr.mxu0 0.0
    %62 = vmatpush1.msra.mxu0 0.0
    %63 = vmatprep.subr.mxu0 0.0
    %64 = vmatpush1.msra.mxu0 0.0
    %65 = vmatprep.subr.mxu0 0.0
    %66 = vmatpush1.msra.mxu0 0.0
    %67 = vmatprep.subr.mxu0 0.0
    %68 = vmatpush1.msra.mxu0 0.0
    %69 = vmatprep.subr.mxu0 0.0
    %70 = vmatpush1.msra.mxu0 0.0
    %71 = vmatprep.subr.mxu0 0.0
    %72 = vmatpush1.msra.mxu0 0.0
    %73 = vmatprep.subr.mxu0 0.0
    %74 = vmatpush1.msra.mxu0 0.0
    %75 = vmatprep.subr.mxu0 0.0
    %76 = vmatpush1.msra.mxu0 0.0
    %77 = vmatprep.subr.mxu0 0.0
    %78 = vmatpush1.msra.mxu0 0.0
    %79 = vmatprep.subr.mxu0 0.0
    %80 = vmatpush1.msra.mxu0 0.0
    %81 = vmatprep.subr.mxu0 0.0
    %82 = vmatpush1.msra.mxu0 0.0
    %83 = vmatprep.subr.mxu0 0.0
    %84 = vmatpush1.msra.mxu0 0.0
    %85 = vmatprep.subr.mxu0 0.0
    %86 = vmatpush1.msra.mxu0 0.0
    %87 = vmatprep.subr.mxu0 0.0
    %88 = vmatpush1.msra.mxu0 0.0
    %89 = vmatprep.subr.mxu0 0.0
    %90 = vmatpush1.msra.mxu0 0.0
    %91 = vmatprep.subr.mxu0 0.0
    %92 = vmatpush1.msra.mxu0 0.0
    %93 = vmatprep.subr.mxu0 0.0
    %94 = vmatpush1.msra.mxu0 0.0
    %95 = vmatprep.subr.mxu0 0.0
    %96 = vmatpush1.msra.mxu0 0.0
    %97 = vmatprep.subr.mxu0 0.0
    %98 = vmatpush1.msra.mxu0 0.0
    %99 = vmatprep.subr.mxu0 0.0
    %100 = vmatpush1.msra.mxu0 0.0
    %101 = vmatprep.subr.mxu0 0.0
    %102 = vmatpush1.msra.mxu0 0.0
    %103 = vmatprep.subr.mxu0 0.0
    %104 = vmatpush1.msra.mxu0 0.0
    %105 = vmatprep.subr.mxu0 0.0
    %106 = vmatpush1.msra.mxu0 0.0
    %107 = vmatprep.subr.mxu0 0.0
    %108 = vmatpush1.msra.mxu0 0.0
    %109 = vmatprep.subr.mxu0 0.0
    %110 = vmatpush1.msra.mxu0 0.0
    %111 = vmatprep.mubr.f32.mxu0 0.0
    %112 = vmatmul.mubr.f32.gmra.mrb[0].mxu0 %v38
    %v113 = vpop.f32.mrb[0].mxu0
    %v114 = vadd.f32 %v29, %v113
    %v115 = vpop.f32.mrb[0].mxu0
    %116 = vmatprep.mubr.f32.mxu0 0.0
    %117 = vmatmul.mubr.f32.gmra.mrb[0].mxu0 %v41
    %v118 = vpop.f32.mrb[0].mxu0
    %v119 = vadd.f32 %v34, %v118
    %v120 = vpop.f32.mrb[0].mxu0
    %121 = vdwg.mxu0
    %v122 = vxor.u32 %v114, 2147483648
    %v123 = vxor.u32 %v119, 2147483648
    %v124 = vmul.f32 %v122, 1.442695
    %v125 = vpow.pop %v124
    %v126 = vmul.f32 %v123, 1.442695
    %v127 = vpow.pop %v126
    %v128 = vadd.f32 %v125, 1.0
    %v129 = vadd.f32 %v127, 1.0
    %v130 = vrcp.pop %v128
    %v131 = vmul.f32 1.0, %v130
    %v132 = vrcp.pop %v129
    %v133 = vmul.f32 1.0, %v132
    %v134 = vld [vmem:[%s3] sm:$0x7]
    %v135 = vld [vmem:[%s4] sm:$0x7]
    %137 = vset.pattern.permute.xlu0 0
    %138 = vperm.xlu0 %137, %v135
    %v139 = vpop.permute.xlu0 %138
    %vm141 = vcmask 130048
    %v143 = vsel %vm141, %v134, 0
    %145 = vmatprep.subr.mxu0 0.0
    %146 = vmatpush1.msra.mxu0 %v131
    %147 = vmatprep.subr.mxu0 0.0
    %148 = vmatpush1.msra.mxu0 %v133
    %149 = vmatprep.subr.mxu0 0.0
    %150 = vmatpush1.msra.mxu0 0.0
    %151 = vmatprep.subr.mxu0 0.0
    %152 = vmatpush1.msra.mxu0 0.0
    %153 = vmatprep.subr.mxu0 0.0
    %154 = vmatpush1.msra.mxu0 0.0
    %155 = vmatprep.subr.mxu0 0.0
    %156 = vmatpush1.msra.mxu0 0.0
    %157 = vmatprep.subr.mxu0 0.0
    %158 = vmatpush1.msra.mxu0 0.0
    %159 = vmatprep.subr.mxu0 0.0
    %160 = vmatpush1.msra.mxu0 0.0
    %161 = vmatprep.subr.mxu0 0.0
    %162 = vmatpush1.msra.mxu0 0.0
    %163 = vmatprep.subr.mxu0 0.0
    %164 = vmatpush1.msra.mxu0 0.0
    %165 = vmatprep.subr.mxu0 0.0
    %166 = vmatpush1.msra.mxu0 0.0
    %167 = vmatprep.subr.mxu0 0.0
    %168 = vmatpush1.msra.mxu0 0.0
    %169 = vmatprep.subr.mxu0 0.0
    %170 = vmatpush1.msra.mxu0 0.0
    %171 = vmatprep.subr.mxu0 0.0
    %172 = vmatpush1.msra.mxu0 0.0
    %173 = vmatprep.subr.mxu0 0.0
    %174 = vmatpush1.msra.mxu0 0.0
    %175 = vmatprep.subr.mxu0 0.0
    %176 = vmatpush1.msra.mxu0 0.0
    %177 = vmatprep.subr.mxu0 0.0
    %178 = vmatpush1.msra.mxu0 0.0
    %179 = vmatprep.subr.mxu0 0.0
    %180 = vmatpush1.msra.mxu0 0.0
    %181 = vmatprep.subr.mxu0 0.0
    %182 = vmatpush1.msra.mxu0 0.0
    %183 = vmatprep.subr.mxu0 0.0
    %184 = vmatpush1.msra.mxu0 0.0
    %185 = vmatprep.subr.mxu0 0.0
    %186 = vmatpush1.msra.mxu0 0.0
    %187 = vmatprep.subr.mxu0 0.0
    %188 = vmatpush1.msra.mxu0 0.0
    %189 = vmatprep.subr.mxu0 0.0
    %190 = vmatpush1.msra.mxu0 0.0
    %191 = vmatprep.subr.mxu0 0.0
    %192 = vmatpush1.msra.mxu0 0.0
    %193 = vmatprep.subr.mxu0 0.0
    %194 = vmatpush1.msra.mxu0 0.0
    %195 = vmatprep.subr.mxu0 0.0
    %196 = vmatpush1.msra.mxu0 0.0
    %197 = vmatprep.subr.mxu0 0.0
    %198 = vmatpush1.msra.mxu0 0.0
    %199 = vmatprep.subr.mxu0 0.0
    %200 = vmatpush1.msra.mxu0 0.0
    %201 = vmatprep.subr.mxu0 0.0
    %202 = vmatpush1.msra.mxu0 0.0
    %203 = vmatprep.subr.mxu0 0.0
    %204 = vmatpush1.msra.mxu0 0.0
    %205 = vmatprep.subr.mxu0 0.0
    %206 = vmatpush1.msra.mxu0 0.0
    %207 = vmatprep.subr.mxu0 0.0
    %208 = vmatpush1.msra.mxu0 0.0
    %209 = vmatprep.mubr.f32.mxu0 0.0
    %210 = vmatmul.mubr.f32.gmra.mrb[0].mxu0 %v143
    %v211 = vpop.f32.mrb[0].mxu0
    %v212 = vadd.f32 %v139, %v211
    %v213 = vpop.f32.mrb[0].mxu0
    %214 = vdwg.mxu0
    %vm215 = vcmask 59392
    %216 = vst.msk [vmem:[#allocation2] sm:$0x7] %vm215, %v212
    // Predicated region
    $region22: #{mlp_forward.1} parent=1 // pred_check
      _
    $region23: #{mlp_forward.1} parent=1 // pred_check_branch
      %218 = sbr.rel (0) target = $region25
    $region24: #{mlp_forward.1} parent=1 // pred_region
      %s220 = ssub.s32 64, 64
      %221 = vsyncadd [#allocation3], %s220
      %s223 = sshll.u32 [#allocation2], 4
      %s224 = int_to_ptr.vmem [resolvable:$true] %s223
      %226 = dma.vmem_to_hbm [thread:$0]  %s224, 64, %s5, [#allocation3]
    $region25: #{mlp_forward.1} parent=1 // pred_fallthru
      _
    // Predicated region
    $region26: #{mlp_forward.1} parent=1 // pred_check
      _
    $region27: #{mlp_forward.1} parent=1 // pred_check_branch
      %228 = sbr.rel (0) target = $region29
    $region28: #{mlp_forward.1} parent=1 // pred_region
      %229 = dma.done [#allocation3], 64
    $region29: #{mlp_forward.1} parent=1 // pred_fallthru
      _
    %230 = vsyncpa [#allocation3], 1

</llo_original>
